<compile_context>
chip_gen: v6e
topology: v6e:2x2x1
jax: 0.10.0
libtpu: 0.0.40
codegen_flags: <defaults>
</compile_context>

<pallas_src>
import jax
import jax.numpy as jnp
from jax.experimental import pallas as pl
from jax.experimental.pallas import tpu as pltpu


def _focus_conv_kernel(x_ref, w_ref, bias_ref, o_ref):
    # x_ref:    (K, TILE_M)   space-to-depth activations, pixels on lanes
    # w_ref:    (Cout, K)     conv weight with BN scale folded in (compute dtype)
    # bias_ref: (Cout, 1)     folded BN shift (f32), lane-broadcast
    # o_ref:    (Cout, TILE_M)
    #
    # NOTE: on the last (partial) M tile the padding lanes hold uninitialized
    # data; the SiLU runs on them too but Pallas masks them on writeback.  Do
    # NOT "fix" this by zero-initializing -- it would only add VPU work.
    y = jnp.dot(w_ref[...], x_ref[...], preferred_element_type=jnp.float32)
    y = y + bias_ref[...]
    o_ref[...] = (y * jax.nn.sigmoid(y)).astype(o_ref.dtype)   # SiLU epilogue


def _vmem_limit_bytes():
    # Generation-aware: v5e/v6e have 128 MiB VMEM per TensorCore, v7x only 64 MiB.
    # Fall back to the smallest (v7x) if the query is unavailable.
    default_cap = 64 * 1024 * 1024
    try:
        cap = int(getattr(pltpu.get_tpu_info(), "vmem_capacity_bytes", default_cap))
    except Exception:
        cap = default_cap
    return min(cap * 3 // 4, 96 * 1024 * 1024)


def _pick_tile_m(M, K, Cout, itemsize, vmem_limit):
    # Per output-lane VMEM bytes per grid step:
    #   double-buffered input (K) + output (Cout) blocks in the compute dtype,
    #   plus ~3 live (Cout,) f32 temporaries for the matmul/SiLU epilogue.
    per_lane = 2 * (K + Cout) * itemsize + 3 * 4 * Cout
    budget = vmem_limit // 2            # headroom: weights, bias, internal scratch
    tile = int(max(512, min(budget // per_lane, 65536)))
    tile = (tile // 512) * 512          # keep a multiple of 128 lanes
    if M <= tile:
        return M                        # full-extent lane block is always legal
    return tile


def focus_forward(x_nchw, conv_weight, bn_gamma, bn_beta, bn_mean, bn_var,
                  eps=1e-5, compute_dtype=jnp.bfloat16, allow_input_fusion=True):
    """x_nchw: (N, Cin, H, W), H and W even.  conv_weight: (Cout, 4*Cin, 1, 1).

    Returns (N, Cout, H//2, W//2) in `compute_dtype` (bf16 by default)."""
    N, Cin, H, W = x_nchw.shape
    Cout = conv_weight.shape[0]
    assert H % 2 == 0 and W % 2 == 0, "Focus needs even spatial dims"
    # TODO(synk): only the Focus default ksize=1 (pointwise BaseConv) is implemented.
    assert conv_weight.shape[2] == 1 and conv_weight.shape[3] == 1
    Ho, Wo = H // 2, W // 2
    K = 4 * Cin
    M = Ho * Wo
    compute_dtype = jnp.dtype(compute_dtype)
    itemsize = compute_dtype.itemsize

    # --- space-to-depth -> lane-dense (N, K, M), fused with the dtype cast ---
    # (N,Cin,H,W) --free reshape--> (N, c, ho, hp, wo, wp).  torch.cat order
    # [tl, bl, tr, br] corresponds to k = wp*(2*Cin) + hp*Cin + c, i.e.
    # transpose to (N, wp, hp, c, ho, wo).  One fused XLA read+write of the
    # (small) input side; allow_input_fusion lets XLA pull it into the operand.
    x6 = x_nchw.reshape(N, Cin, Ho, 2, Wo, 2)
    x_km = jnp.transpose(x6, (0, 5, 3, 1, 2, 4)).reshape(N, K, M).astype(compute_dtype)

    # --- fold BatchNorm (eval form) into the conv weight + a bias -------------
    inv_std = jax.lax.rsqrt(bn_var.astype(jnp.float32) + eps)
    scale = bn_gamma.astype(jnp.float32) * inv_std                    # (Cout,)
    shift = bn_beta.astype(jnp.float32) - bn_mean.astype(jnp.float32) * scale
    w = (conv_weight.reshape(Cout, K).astype(jnp.float32)
         * scale[:, None]).astype(compute_dtype)                      # (Cout, K)
    bias = shift.reshape(Cout, 1)                                     # (Cout, 1) f32

    # --- generation-aware tiling over the pixel (lane) axis -------------------
    vmem_limit = _vmem_limit_bytes()
    tile_m = _pick_tile_m(M, K, Cout, itemsize, vmem_limit)
    num_m_tiles = pl.cdiv(M, tile_m)
    grid = (num_m_tiles, N)            # large M-tile axis leading (v7x 2-TC split)

    cost = pl.CostEstimate(
        flops=2 * N * M * K * Cout,
        transcendentals=N * M * Cout,
        bytes_accessed=(N * K * M * itemsize        # activations (space-to-depth)
                        + Cout * K * itemsize       # folded weight
                        + Cout * 4                  # folded bias (f32)
                        + N * Cout * M * itemsize)) # output

    compiler_params = pltpu.CompilerParams(
        dimension_semantics=("parallel", "parallel"),
        vmem_limit_bytes=int(vmem_limit),
        allow_input_fusion=[bool(allow_input_fusion), False, False],
    )

    out = pl.pallas_call(
        _focus_conv_kernel,
        out_shape=jax.ShapeDtypeStruct((N, Cout, M), compute_dtype),
        grid=grid,
        in_specs=[
            pl.BlockSpec((None, K, tile_m), lambda m, n: (n, 0, m)),   # activations
            pl.BlockSpec((Cout, K), lambda m, n: (0, 0)),              # folded weight
            pl.BlockSpec((Cout, 1), lambda m, n: (0, 0)),              # folded bias
        ],
        out_specs=pl.BlockSpec((None, Cout, tile_m), lambda m, n: (n, 0, m)),
        compiler_params=compiler_params,
        cost_estimate=cost,
    )(x_km, w, bias)

    # (N, Cout, Ho*Wo) -> NCHW is a free reshape.
    return out.reshape(N, Cout, Ho, Wo)


def _reference(x_nchw, conv_weight, bn_gamma, bn_beta, bn_mean, bn_var, eps=1e-5):
    tl = x_nchw[..., ::2, ::2]
    tr = x_nchw[..., ::2, 1::2]
    bl = x_nchw[..., 1::2, ::2]
    br = x_nchw[..., 1::2, 1::2]
    x = jnp.concatenate((tl, bl, tr, br), axis=1)
    y = jnp.einsum("nkhw,ok->nohw", x,
                   conv_weight.reshape(conv_weight.shape[0], -1))
    inv_std = 1.0 / jnp.sqrt(bn_var + eps)
    y = (y - bn_mean[None, :, None, None]) * (bn_gamma * inv_std)[None, :, None, None] \
        + bn_beta[None, :, None, None]
    return y * jax.nn.sigmoid(y)


if __name__ == "__main__":
    key = jax.random.PRNGKey(0)
    kx, kw, kg, kb, km, kv = jax.random.split(key, 6)

    N, Cin, H, W = 2, 4, 16, 16
    Cout = 8
    ksize = 1  # Focus default

    x = jax.random.normal(kx, (N, Cin, H, W), dtype=jnp.float32)
    conv_w = jax.random.normal(kw, (Cout, 4 * Cin, ksize, ksize),
                               dtype=jnp.float32) * 0.1
    # Non-trivial BatchNorm2d eval-mode statistics to exercise the BN fold.
    bn_gamma = 1.0 + 0.1 * jax.random.normal(kg, (Cout,), jnp.float32)
    bn_beta = 0.1 * jax.random.normal(kb, (Cout,), jnp.float32)
    bn_mean = 0.05 * jax.random.normal(km, (Cout,), jnp.float32)
    bn_var = jax.random.uniform(kv, (Cout,), jnp.float32, 0.5, 1.5)

    ref = _reference(x, conv_w, bn_gamma, bn_beta, bn_mean, bn_var)

    # Exact-math check: f32 end to end.
    out_f32 = jax.block_until_ready(
        focus_forward(x, conv_w, bn_gamma, bn_beta, bn_mean, bn_var,
                      compute_dtype=jnp.float32))
    assert out_f32.shape == (N, Cout, H // 2, W // 2), out_f32.shape
    assert jnp.allclose(out_f32, ref, atol=1e-4, rtol=1e-4), "f32 mismatch vs reference"

    # Default inference path: bf16 I/O with f32 accumulation (bf16 quantization
    # of the BN-folded weight gives ~1e-2 relative error -- expected/documented).
    out_bf16 = jax.block_until_ready(
        focus_forward(x, conv_w, bn_gamma, bn_beta, bn_mean, bn_var))
    assert out_bf16.dtype == jnp.bfloat16
    assert jnp.allclose(out_bf16.astype(jnp.float32), ref, atol=5e-2, rtol=5e-2), \
        "bf16 mismatch vs reference"

    print("KERNEL_OK")
</pallas_src>

<mosaic_0001>
module attributes {stable_mosaic.version = 11 : i64} {
  func.func @_focus_conv_kernel(%arg0: i32, %arg1: i32, %arg2: memref<1x16x64xf32, #tpu.memory_space<vmem>>, %arg3: memref<8x16xf32, #tpu.memory_space<vmem>>, %arg4: memref<8x1xf32, #tpu.memory_space<vmem>>, %arg5: memref<1x8x64xf32, #tpu.memory_space<vmem>>) attributes {dimension_semantics = [#tpu.dimension_semantics<parallel>, #tpu.dimension_semantics<parallel>], iteration_bounds = array<i64: 1, 2>, scalar_prefetch = 0 : i64, scratch_operands = 0 : i64, tpu.core_type = #tpu.core_type<tc>, window_params = [{transform_indices = @transform_0, window_bounds = array<i64: 1, 16, 64>}, {pipeline_mode = #tpu.pipeline_mode<synchronous>, transform_indices = @transform_1, window_bounds = array<i64: 8, 16>}, {pipeline_mode = #tpu.pipeline_mode<synchronous>, transform_indices = @transform_2, window_bounds = array<i64: 8, 1>}, {transform_indices = @transform_3, window_bounds = array<i64: 1, 8, 64>}]} {
    %c0 = arith.constant 0 : index
    %c0_0 = arith.constant 0 : index
    %0 = vector.load %arg3[%c0, %c0_0] : memref<8x16xf32, #tpu.memory_space<vmem>>, vector<8x16xf32>
    %c0_1 = arith.constant 0 : index
    %c0_2 = arith.constant 0 : index
    %c0_3 = arith.constant 0 : index
    %1 = vector.load %arg2[%c0_1, %c0_2, %c0_3] : memref<1x16x64xf32, #tpu.memory_space<vmem>>, vector<1x16x64xf32>
    %2 = vector.shape_cast %1 : vector<1x16x64xf32> to vector<16x64xf32>
    %cst = arith.constant dense<0.000000e+00> : vector<8x64xf32>
    %3 = tpu.matmul %0, %2, %cst {dimension_numbers = #tpu.dot_dimension_numbers<[1], [0], [0], [1], [0, 0, 1, 1], [], []>} : vector<8x16xf32>, vector<16x64xf32>, vector<8x64xf32> -> vector<8x64xf32>
    %c0_4 = arith.constant 0 : index
    %c0_5 = arith.constant 0 : index
    %4 = vector.load %arg4[%c0_4, %c0_5] : memref<8x1xf32, #tpu.memory_space<vmem>>, vector<8x1xf32>
    %5 = vector.broadcast %4 : vector<8x1xf32> to vector<8x64xf32>
    %6 = arith.addf %3, %5 : vector<8x64xf32>
    %7 = arith.negf %6 : vector<8x64xf32>
    %8 = math.exp %7 : vector<8x64xf32>
    %cst_6 = arith.constant 1.000000e+00 : f32
    %9 = vector.broadcast %cst_6 : f32 to vector<8x64xf32>
    %10 = arith.addf %9, %8 : vector<8x64xf32>
    %11 = arith.divf %9, %10 : vector<8x64xf32>
    %12 = arith.mulf %6, %11 : vector<8x64xf32>
    %c0_7 = arith.constant 0 : index
    %c0_8 = arith.constant 0 : index
    %c0_9 = arith.constant 0 : index
    %13 = vector.load %arg5[%c0_7, %c0_8, %c0_9] : memref<1x8x64xf32, #tpu.memory_space<vmem>>, vector<1x8x64xf32>
    %14 = vector.shape_cast %13 : vector<1x8x64xf32> to vector<8x64xf32>
    %15 = vector.shape_cast %12 : vector<8x64xf32> to vector<1x8x64xf32>
    tpu.vector_store %arg5[%c0_7, %c0_8, %c0_9], %15 {strides = array<i32>} : memref<1x8x64xf32, #tpu.memory_space<vmem>>, vector<1x8x64xf32>,
    return
  }
  func.func @transform_0(%arg0: i32, %arg1: i32) -> (i32, i32, i32) {
    %c0_i32 = arith.constant 0 : i32
    %c0_i32_0 = arith.constant 0 : i32
    return %arg1, %c0_i32, %arg0 : i32, i32, i32
  }
  func.func @transform_1(%arg0: i32, %arg1: i32) -> (i32, i32) {
    %c0_i32 = arith.constant 0 : i32
    %c0_i32_0 = arith.constant 0 : i32
    %c0_i32_1 = arith.constant 0 : i32
    return %c0_i32, %c0_i32_0 : i32, i32
  }
  func.func @transform_2(%arg0: i32, %arg1: i32) -> (i32, i32) {
    %c0_i32 = arith.constant 0 : i32
    %c0_i32_0 = arith.constant 0 : i32
    %c0_i32_1 = arith.constant 0 : i32
    return %c0_i32, %c0_i32_0 : i32, i32
  }
  func.func @transform_3(%arg0: i32, %arg1: i32) -> (i32, i32, i32) {
    %c0_i32 = arith.constant 0 : i32
    %c0_i32_0 = arith.constant 0 : i32
    return %arg1, %c0_i32, %arg0 : i32, i32, i32
  }
}

</mosaic_0001>

<llo_original>
// kernel: tpu_custom_call.1
$region0: #{tpu_custom_call.1}
  #allocation0 [shape = 'u32[]', space=smem, size = 0x4, offset = 0x4, fixed_abs, tag = 'smem constant byte address 0x4 - core index']
  #allocation1 [shape = 'u32[144,128]{1,0:T(1,128)}', space=vmem, size = 0x12000, scoped, tag = 'internal scratch']
  %s0 = inlined_call_operand.hbm [shape: f32[2,16,64], index: 0, kind: input, shape index: {}]
  %s1 = inlined_call_operand.vmem [shape: f32[8,16], index: 1, kind: input, shape index: {}]
  %s2 = inlined_call_operand.vmem [shape: f32[8,1], index: 2, kind: input, shape index: {}]
  %s3 = inlined_call_operand.hbm [shape: f32[2,8,64], index: 3, kind: output, shape index: {}]
  %s4 = sld [smem:[#allocation0]]
  $region49: #{tpu_custom_call.1} parent=0
    _
  %s6 = ssub.s32 1, %s4
  %s7 = scalar_select 0, %s6, %s4
  $region1: #{tpu_custom_call.1} parent=0
    #allocation2 [shape = 'u8[16384]{0}', space=vmem, size = 0x4000, scoped, tag = 'input window, operand 0']
    #allocation3 [shape = 's32[2]{0}', space=sflag, size = 0x8, scoped, tag = 'scoped memory for tpu_custom_call.1']
    #allocation4 [shape = 's32[2]{0}', space=sflag, size = 0x8, scoped, tag = 'scoped memory for tpu_custom_call.1']
    #allocation5 [shape = 'u8[8192]{0}', space=vmem, size = 0x2000, scoped, tag = 'output window, operand 0']
    %8 = vsyncpa [#allocation3], 0
    %s9 = scalar_lea.sflag [#allocation3], 1
    %10 = vsyncpa %s9, 0
    %11 = vsyncpa [#allocation4], 0
    %s12 = scalar_lea.sflag [#allocation4], 1
    %13 = vsyncpa %s12, 0
    loop: start=0, step=1, limit=4
    $region2: #{tpu_custom_call.1} parent=1 // loop_pre_header
      _
    $region3: #{tpu_custom_call.1} parent=1 // loop_header
      %s15 = sphi 0, %s19
      %p16 = scmp.ge.s32.totalorder %s15, 4
      %s22 = sphi 0, %s34
      %s23 = sphi 0, %s30
      %s24 = sphi 0, %s22
      %s25 = sphi 0, %s23
      %s26 = sphi 0, %s24
      %s27 = sphi 0, %s25
      %s39 = sphi 0, %s41
      %s42 = sphi 0, %s39
      %s43 = sphi 0, %s42
      %s59 = sphi 0, %s43
      %s63 = sphi 0, %s63
      %s65 = sphi 0, %s63
      %s66 = sphi 0, %s65
      %s80 = sphi 0, %s66
      %s84 = sphi 0, %s84
      %s86 = sphi 0, %s84
      %s87 = sphi 0, %s86
      %s101 = sphi 0, %s87
      %s109 = sphi 0, %s111
      %s112 = sphi 0, %s109
      %s113 = sphi 0, %s112
      %s129 = sphi 0, %s113
    $region4: #{tpu_custom_call.1} parent=1 // loop_header_branch
      %18 = sbr.rel (%p16) target = $region8
    $region5: #{tpu_custom_call.1} parent=1 // loop_body
      %s20 = ssub.s32 %s15, 1
      %s21 = ssub.s32 %s15, 2
      %s28 = sadd.s32 1, %s23
      %p29 = scmp.ge.s32.totalorder %s28, 2
      %s30 = scalar_select %p29, 0, %s28
      %s31 = sadd.s32 1, %s22
      %s32 = scalar_select %p29, %s31, %s22
      %p33 = scmp.ge.s32.totalorder %s32, 1
      %s34 = scalar_select %p33, 0, %s32
      %s35 = ssub.s32 %s23, %s30
      %s36 = ssub.s32 %s22, %s34
      %s37 = sor.u32 %s35, %s36
      %p38 = scmp.eq.s32.totalorder %s37, 0
      %s40 = sadd.s32 %s39, 1
      %s41 = scalar_select %p38, %s39, %s40
      %p44 = pneg %p38
      %p45 = scmp.eq.s32.totalorder %s15, 1
      %p46 = por %p44, %p45
      %p47 = scmp.ne.s32.totalorder %s39, %s42
      %p48 = scmp.eq.s32.totalorder %s15, 0
      %p49 = por %p47, %p48
      %p50 = scmp.ne.s32.totalorder %s39, %s42
      %p51 = scmp.eq.s32.totalorder %s20, 1
      %p52 = por %p50, %p51
      %p53 = scmp.ne.s32.totalorder %s42, %s43
      %p54 = scmp.eq.s32.totalorder %s20, 0
      %p55 = por %p53, %p54
      %p56 = scmp.ne.s32.totalorder %s42, %s43
      %p57 = scmp.eq.s32.totalorder %s21, 1
      %p58 = por %p56, %p57
      %p60 = scmp.ne.s32.totalorder %s43, %s59
      %p61 = scmp.eq.s32.totalorder %s21, 0
      %p62 = por %p60, %p61
      %s64 = sadd.s32 %s63, 1
      %p67 = scmp.eq.s32.totalorder %s15, 1
      %p68 = scmp.ne.s32.totalorder %s63, %s65
      %p69 = scmp.eq.s32.totalorder %s15, 0
      %p70 = por %p68, %p69
      %p71 = scmp.ne.s32.totalorder %s63, %s65
      %p72 = scmp.eq.s32.totalorder %s20, 1
      %p73 = por %p71, %p72
      %p74 = scmp.ne.s32.totalorder %s65, %s66
      %p75 = scmp.eq.s32.totalorder %s20, 0
      %p76 = por %p74, %p75
      %p77 = scmp.ne.s32.totalorder %s65, %s66
      %p78 = scmp.eq.s32.totalorder %s21, 1
      %p79 = por %p77, %p78
      %p81 = scmp.ne.s32.totalorder %s66, %s80
      %p82 = scmp.eq.s32.totalorder %s21, 0
      %p83 = por %p81, %p82
      %s85 = sadd.s32 %s84, 1
      %p88 = scmp.eq.s32.totalorder %s15, 1
      %p89 = scmp.ne.s32.totalorder %s84, %s86
      %p90 = scmp.eq.s32.totalorder %s15, 0
      %p91 = por %p89, %p90
      %p92 = scmp.ne.s32.totalorder %s84, %s86
      %p93 = scmp.eq.s32.totalorder %s20, 1
      %p94 = por %p92, %p93
      %p95 = scmp.ne.s32.totalorder %s86, %s87
      %p96 = scmp.eq.s32.totalorder %s20, 0
      %p97 = por %p95, %p96
      %p98 = scmp.ne.s32.totalorder %s86, %s87
      %p99 = scmp.eq.s32.totalorder %s21, 1
      %p100 = por %p98, %p99
      %p102 = scmp.ne.s32.totalorder %s87, %s101
      %p103 = scmp.eq.s32.totalorder %s21, 0
      %p104 = por %p102, %p103
      %s105 = ssub.s32 %s23, %s30
      %s106 = ssub.s32 %s22, %s34
      %s107 = sor.u32 %s105, %s106
      %p108 = scmp.eq.s32.totalorder %s107, 0
      %s110 = sadd.s32 %s109, 1
      %s111 = scalar_select %p108, %s109, %s110
      %p114 = pneg %p108
      %p115 = scmp.eq.s32.totalorder %s15, 1
      %p116 = por %p114, %p115
      %p117 = scmp.ne.s32.totalorder %s109, %s112
      %p118 = scmp.eq.s32.totalorder %s15, 0
      %p119 = por %p117, %p118
      %p120 = scmp.ne.s32.totalorder %s109, %s112
      %p121 = scmp.eq.s32.totalorder %s20, 1
      %p122 = por %p120, %p121
      %p123 = scmp.ne.s32.totalorder %s112, %s113
      %p124 = scmp.eq.s32.totalorder %s20, 0
      %p125 = por %p123, %p124
      %p126 = scmp.ne.s32.totalorder %s112, %s113
      %p127 = scmp.eq.s32.totalorder %s21, 1
      %p128 = por %p126, %p127
      %p130 = scmp.ne.s32.totalorder %s113, %s129
      %p131 = scmp.eq.s32.totalorder %s21, 0
      %p132 = por %p130, %p131
      %p133 = scmp.le.s32.totalorder 1, %s15
      %p134 = scmp.lt.s32.totalorder %s15, 3
      %p135 = pnand %p133, %p134
      %p136 = pneg %p135
      // Predicated region
      $region9: #{tpu_custom_call.1} parent=5 // pred_check
        _
      $region10: #{tpu_custom_call.1} parent=5 // pred_check_branch
        %138 = sbr.rel (%p135) target = $region12
      $region11: #{tpu_custom_call.1} parent=5 // pred_region
        %s139 = ssub.s32 %s15, 1
        // Predicated region
        $region13: #{tpu_custom_call.1} parent=11 // pred_check
          %p140 = pneg %p76
        $region14: #{tpu_custom_call.1} parent=11 // pred_check_branch
          %142 = sbr.rel (%p140) target = $region16
        $region15: #{tpu_custom_call.1} parent=11 // pred_region
          _
        $region16: #{tpu_custom_call.1} parent=11 // pred_fallthru
          _
        // Predicated region
        $region17: #{tpu_custom_call.1} parent=11 // pred_check
          %p143 = pneg %p97
        $region18: #{tpu_custom_call.1} parent=11 // pred_check_branch
          %145 = sbr.rel (%p143) target = $region20
        $region19: #{tpu_custom_call.1} parent=11 // pred_region
          _
        $region20: #{tpu_custom_call.1} parent=11 // pred_fallthru
          _
      $region12: #{tpu_custom_call.1} parent=5 // pred_fallthru
        _
      %p146 = scmp.lt.s32.totalorder %s15, 2
      // Predicated region
      $region21: #{tpu_custom_call.1} parent=5 // pred_check
        %p147 = pneg %p146
      $region22: #{tpu_custom_call.1} parent=5 // pred_check_branch
        %149 = sbr.rel (%p147) target = $region24
      $region23: #{tpu_custom_call.1} parent=5 // pred_region
        // Predicated region
        $region25: #{tpu_custom_call.1} parent=23 // pred_check
          %p150 = pneg %p49
        $region26: #{tpu_custom_call.1} parent=23 // pred_check_branch
          %152 = sbr.rel (%p150) target = $region28
        $region27: #{tpu_custom_call.1} parent=23 // pred_region
          %s153 = sand.u32 %s39, 1
          %s154 = scalar_lea.sflag [#allocation3], %s153
          %s155 = sand.u32 %s39, 1
          %s156 = smul.addr %s155, 16
          %s157 = scalar_lea.vmem [#allocation2], %s156
          %s159 = ssub.s32 256, 256
          %160 = vsyncadd %s154, %s159
          %s161 = smul.addr %s23, 2
          %s162 = sadd.s32 %s22, %s161
          %s163 = smul.addr %s162, 128
          %s164 = scalar_lea.hbm %s0, %s163
          %s165 = sshll.u32 %s157, 4
          %s166 = int_to_ptr.vmem [resolvable:$true] %s165
          %171 = dma.hbm_to_vmem [thread:$0]  %s164, 256, %s166, %s154, 128, 128, 8
        $region28: #{tpu_custom_call.1} parent=23 // pred_fallthru
          _
      $region24: #{tpu_custom_call.1} parent=5 // pred_fallthru
        _
      %p172 = scmp.le.s32.totalorder 1, %s15
      %p173 = scmp.lt.s32.totalorder %s15, 3
      %p174 = pnand %p172, %p173
      %p175 = pneg %p174
      // Predicated region
      $region29: #{tpu_custom_call.1} parent=5 // pred_check
        _
      $region30: #{tpu_custom_call.1} parent=5 // pred_check_branch
        %177 = sbr.rel (%p174) target = $region32
      $region31: #{tpu_custom_call.1} parent=5 // pred_region
        %s178 = ssub.s32 %s15, 1
        %s179 = sand.u32 %s42, 1
        %s180 = scalar_lea.sflag [#allocation3], %s179
        %s181 = sand.u32 %s42, 1
        %s182 = smul.addr %s181, 16
        %s183 = scalar_lea.vmem [#allocation2], %s182
        // Predicated region
        $region33: #{tpu_custom_call.1} parent=31 // pred_check
          %p184 = pneg %p55
        $region34: #{tpu_custom_call.1} parent=31 // pred_check_branch
          %186 = sbr.rel (%p184) target = $region36
        $region35: #{tpu_custom_call.1} parent=31 // pred_region
          %187 = dma.done %s180, 256
        $region36: #{tpu_custom_call.1} parent=31 // pred_fallthru
          _
        %s188 = sand.u32 %s42, 1
        %s189 = scalar_lea.sflag [#allocation3], %s188
        %s190 = sand.u32 %s42, 1
        %s191 = smul.addr %s190, 16
        %s192 = scalar_lea.vmem [#allocation2], %s191
        %p193 = pneg %p55
        %p194 = pneg %p52
        %p195 = pneg %p76
        %p196 = pneg %p73
        %p197 = pneg %p97
        %p198 = pneg %p94
        %p199 = pneg %p125
        %p200 = pneg %p122
        %s201 = sand.u32 %s112, 1
        %s202 = scalar_lea.sflag [#allocation4], %s201
        %s203 = sand.u32 %s112, 1
        %s204 = smul.addr %s203, 8
        %s205 = scalar_lea.vmem [#allocation5], %s204
        %v206 = vld [vmem:[%s1] sm:$0xff]
        %v207 = vld [vmem:[%s183] sm:$0xff]
        %v208 = vld [vmem:[%s183 + $0x8] sm:$0xff]
        %v209 = vld [vmem:[%s2] sm:$0xff]
        %211 = vset.pattern.permute.xlu0 0
        %212 = vperm.xlu0 %211, %v209
        %v213 = vpop.permute.xlu0 %212
        %vm215 = vcmask 130048
        %v217 = vsel %vm215, %v206, 0
        %219 = vmatprep.subr.mxu0 0.0
        %220 = vmatpush1.msra.mxu0 0.0
        %221 = vmatprep.subr.mxu0 0.0
        %222 = vmatpush1.msra.mxu0 0.0
        %223 = vmatprep.subr.mxu0 0.0
        %224 = vmatpush1.msra.mxu0 0.0
        %225 = vmatprep.subr.mxu0 0.0
        %226 = vmatpush1.msra.mxu0 0.0
        %227 = vmatprep.subr.mxu0 0.0
        %228 = vmatpush1.msra.mxu0 0.0
        %229 = vmatprep.subr.mxu0 0.0
        %230 = vmatpush1.msra.mxu0 0.0
        %231 = vmatprep.subr.mxu0 0.0
        %232 = vmatpush1.msra.mxu0 0.0
        %233 = vmatprep.subr.mxu0 0.0
        %234 = vmatpush1.msra.mxu0 0.0
        %235 = vmatprep.subr.mxu0 0.0
        %236 = vmatpush1.msra.mxu0 0.0
        %237 = vmatprep.subr.mxu0 0.0
        %238 = vmatpush1.msra.mxu0 0.0
        %239 = vmatprep.subr.mxu0 0.0
        %240 = vmatpush1.msra.mxu0 0.0
        %241 = vmatprep.subr.mxu0 0.0
        %242 = vmatpush1.msra.mxu0 0.0
        %243 = vmatprep.subr.mxu0 0.0
        %244 = vmatpush1.msra.mxu0 0.0
        %245 = vmatprep.subr.mxu0 0.0
        %246 = vmatpush1.msra.mxu0 0.0
        %247 = vmatprep.subr.mxu0 0.0
        %248 = vmatpush1.msra.mxu0 %v208
        %249 = vmatprep.subr.mxu0 0.0
        %250 = vmatpush1.msra.mxu0 %v207
        %251 = vmatprep.subr.mxu0 0.0
        %252 = vmatpush2.msra.mxu0 0.0
        %253 = vmatprep.subr.mxu0 0.0
        %254 = vmatpush2.msra.mxu0 0.0
        %255 = vmatprep.subr.mxu0 0.0
        %256 = vmatpush2.msra.mxu0 0.0
        %257 = vmatprep.subr.mxu0 0.0
        %258 = vmatpush2.msra.mxu0 0.0
        %259 = vmatprep.subr.mxu0 0.0
        %260 = vmatpush2.msra.mxu0 0.0
        %261 = vmatprep.subr.mxu0 0.0
        %262 = vmatpush2.msra.mxu0 0.0
        %263 = vmatprep.subr.mxu0 0.0
        %264 = vmatpush2.msra.mxu0 0.0
        %265 = vmatprep.subr.mxu0 0.0
        %266 = vmatpush2.msra.mxu0 0.0
        %267 = vmatprep.subr.mxu0 0.0
        %268 = vmatpush2.msra.mxu0 0.0
        %269 = vmatprep.subr.mxu0 0.0
        %270 = vmatpush2.msra.mxu0 0.0
        %271 = vmatprep.subr.mxu0 0.0
        %272 = vmatpush2.msra.mxu0 0.0
        %273 = vmatprep.subr.mxu0 0.0
        %274 = vmatpush2.msra.mxu0 0.0
        %275 = vmatprep.subr.mxu0 0.0
        %276 = vmatpush2.msra.mxu0 0.0
        %277 = vmatprep.subr.mxu0 0.0
        %278 = vmatpush2.msra.mxu0 0.0
        %279 = vmatprep.subr.mxu0 0.0
        %280 = vmatpush2.msra.mxu0 0.0
        %281 = vmatprep.subr.mxu0 0.0
        %282 = vmatpush2.msra.mxu0 0.0
        %283 = vmatprep.mubr.f32.mxu0 0.0
        %284 = vmatmul.mubr.f32.gmra.mxu0 %v217
        %v285 = vpop.f32.mrf.mxu0
        %v286 = vadd.f32 %v213, %v285
        %v287 = vpop.f32.mrf.mxu0
        %288 = vdwg.mxu0
        %v289 = vxor.u32 %v286, 2147483648
        %v290 = vmul.f32 %v289, 1.442695
        %v291 = vpow.pop %v290
        %v292 = vadd.f32 %v291, 1.0
        %v293 = vrcp.pop %v292
        %v294 = vmul.f32 1.0, %v293
        %v295 = vmul.f32 %v286, %v294
        %vm296 = vcmask 523264
        %297 = vst.msk [vmem:[%s205] sm:$0xff] %vm296, %v295
        %s298 = sand.u32 %s112, 1
        %s299 = scalar_lea.sflag [#allocation4], %s298
        %s300 = sand.u32 %s112, 1
        %s301 = smul.addr %s300, 8
        %s302 = scalar_lea.vmem [#allocation5], %s301
        // Predicated region
        $region37: #{tpu_custom_call.1} parent=31 // pred_check
          %p303 = pneg %p122
        $region38: #{tpu_custom_call.1} parent=31 // pred_check_branch
          %305 = sbr.rel (%p303) target = $region40
        $region39: #{tpu_custom_call.1} parent=31 // pred_region
          %s307 = ssub.s32 128, 128
          %308 = vsyncadd %s299, %s307
          %s309 = sadd.s32 %s24, %s25
          %s310 = smul.addr %s309, 128
          %s311 = scalar_lea.hbm %s3, %s310
          %s313 = sshll.u32 %s302, 4
          %s314 = int_to_ptr.vmem [resolvable:$true] %s313
          %316 = dma.vmem_to_hbm [thread:$0]  %s314, 128, %s311, %s299
        $region40: #{tpu_custom_call.1} parent=31 // pred_fallthru
          _
      $region32: #{tpu_custom_call.1} parent=5 // pred_fallthru
        _
      %p317 = scmp.le.s32.totalorder 2, %s15
      // Predicated region
      $region41: #{tpu_custom_call.1} parent=5 // pred_check
        %p318 = pneg %p317
      $region42: #{tpu_custom_call.1} parent=5 // pred_check_branch
        %320 = sbr.rel (%p318) target = $region44
      $region43: #{tpu_custom_call.1} parent=5 // pred_region
        %s321 = ssub.s32 %s15, 2
        // Predicated region
        $region45: #{tpu_custom_call.1} parent=43 // pred_check
          %p322 = pneg %p128
        $region46: #{tpu_custom_call.1} parent=43 // pred_check_branch
          %324 = sbr.rel (%p322) target = $region48
        $region47: #{tpu_custom_call.1} parent=43 // pred_region
          %s325 = sand.u32 %s113, 1
          %s326 = scalar_lea.sflag [#allocation4], %s325
          %s327 = sand.u32 %s113, 1
          %s328 = smul.addr %s327, 8
          %s329 = scalar_lea.vmem [#allocation5], %s328
          %330 = dma.done %s326, 128
        $region48: #{tpu_custom_call.1} parent=43 // pred_fallthru
          _
      $region44: #{tpu_custom_call.1} parent=5 // pred_fallthru
        _
    $region6: #{tpu_custom_call.1} parent=1 // loop_footer
      %s19 = sadd.s32 1, %s15
    $region7: #{tpu_custom_call.1} parent=1 // loop_footer_branch
      %14 = sbr.rel target = $region3
    $region8: #{tpu_custom_call.1} parent=1 // loop_exit
      _
    %331 = vsyncpa [#allocation3], 1
    %s332 = scalar_lea.sflag [#allocation3], 1
    %333 = vsyncpa %s332, 1
    %334 = vsyncpa [#allocation4], 1
    %s335 = scalar_lea.sflag [#allocation4], 1
    %336 = vsyncpa %s335, 1

</llo_original>
